<compile_context>
chip_gen: v5e
topology: v5e:2x2
jax: 0.10.0
libtpu: 0.0.40
codegen_flags: <defaults>
</compile_context>

<pallas_src>
import jax
import jax.numpy as jnp
from jax.experimental import pallas as pl
from jax.experimental.pallas import tpu as pltpu


def _chomp_copy_kernel(x_ref, o_ref):
    # Input and output blocks have identical shapes: a plain full-block copy.
    # Lanes/rows past the real array extents are masked at writeback.
    o_ref[...] = x_ref[...]


_TARGET_BLOCK_BYTES = 2 << 20   # ~2 MiB per buffer; 4x that when double-buffered
_SMALL_BYTES = 1 << 20          # below this, a fused XLA slice beats a kernel


def _round_up(a: int, m: int) -> int:
    return ((a + m - 1) // m) * m


def chomp1d(x: jax.Array, chomp_size: int) -> jax.Array:
    """Pallas implementation of BrisT1DChomp1d.forward for an NCL tensor."""
    if chomp_size <= 0:
        # Mirrors the PyTorch module: `if self.chomp_size > 0` guard.
        return x
    n, c, l = x.shape
    l_out = l - chomp_size
    if l_out <= 0:
        # PyTorch negative-slice semantics: empty length axis.
        return x[:, :, :0]

    r = n * c
    itemsize = jnp.dtype(x.dtype).itemsize
    out_bytes = r * l_out * itemsize

    # Small / narrow shapes: plain slice (fusable downstream, no kernel cost,
    # no sub-128-lane masked stores).
    if l_out < 128 or out_bytes < _SMALL_BYTES:
        return jax.lax.slice(x, (0, 0, 0), (n, c, l_out))

    x2 = x.reshape(r, l)

    # Lane tile: whole output length rounded up to 128, capped so even an
    # 8-row block stays within the byte budget for very long sequences.
    max_tl = max(128, (_TARGET_BLOCK_BYTES // (8 * itemsize)) // 128 * 128)
    tl = min(_round_up(l_out, 128), max_tl)
    grid_l = pl.cdiv(l_out, tl)

    # Row tile: fill the remaining byte budget, multiple of 8, bounded by r.
    rows_budget = max(8, (_TARGET_BLOCK_BYTES // (tl * itemsize)) // 8 * 8)
    tm = min(_round_up(r, 8), rows_budget)
    grid_r = pl.cdiv(r, tm)

    # v7x megacore: give both TensorCores work on non-trivial single-block
    # copies by splitting the row axis in two.
    if grid_r * grid_l == 1 and r >= 16:
        tm = _round_up((r + 1) // 2, 8)
        grid_r = pl.cdiv(r, tm)

    out2 = pl.pallas_call(
        _chomp_copy_kernel,
        out_shape=jax.ShapeDtypeStruct((r, l_out), x.dtype),
        grid_spec=pltpu.PrefetchScalarGridSpec(
            num_scalar_prefetch=0,
            grid=(grid_r, grid_l),
            in_specs=[pl.BlockSpec((tm, tl), lambda i, j: (i, j))],
            out_specs=pl.BlockSpec((tm, tl), lambda i, j: (i, j)),
        ),
        compiler_params=pltpu.CompilerParams(
            dimension_semantics=("parallel", "parallel"),
        ),
        cost_estimate=pl.CostEstimate(
            flops=0,
            transcendentals=0,
            bytes_accessed=2 * out_bytes,
        ),
    )(x2)
    return out2.reshape(n, c, l_out)


class BrisT1DChomp1dPallas:
    """Mirror of the PyTorch module (stateless: no parameters)."""

    def __init__(self, chomp_size: int):
        self.chomp_size = chomp_size

    def __call__(self, x: jax.Array) -> jax.Array:
        return chomp1d(x, self.chomp_size)


if __name__ == "__main__":
    key = jax.random.PRNGKey(0)
    k1, k2, k3 = jax.random.split(key, 3)

    # Small shape consistent with a 1D TCN input: (batch=2, channels=4, length=16).
    x = jax.random.normal(k1, (2, 4, 16), dtype=jnp.float32)
    chomp_size = 3
    module = BrisT1DChomp1dPallas(chomp_size)
    out = jax.block_until_ready(module(x))
    ref = x[:, :, :-chomp_size]
    assert out.shape == (2, 4, 16 - chomp_size), out.shape
    assert out.dtype == x.dtype
    assert jnp.array_equal(out, ref), "mismatch vs reference slice (small path)"

    # chomp_size == 0 path returns input unchanged (matches the module's guard).
    out0 = jax.block_until_ready(BrisT1DChomp1dPallas(0)(x))
    assert jnp.array_equal(out0, x)

    # Exercise the Pallas path: r=256 rows, L_out=1149 (non-multiple of 128,
    # so the final lane range is masked), and the megacore row split.
    x2 = jax.random.normal(k2, (4, 64, 1152), dtype=jnp.float32)
    out2 = jax.block_until_ready(BrisT1DChomp1dPallas(3)(x2))
    assert out2.shape == (4, 64, 1149), out2.shape
    assert jnp.array_equal(out2, x2[:, :, :-3]), "mismatch vs reference (pallas path)"

    # Fully lane-aligned Pallas path: L_out = 1024, chomped tail never read.
    x3 = jax.random.normal(k3, (4, 64, 1152), dtype=jnp.float32)
    out3 = jax.block_until_ready(BrisT1DChomp1dPallas(128)(x3))
    assert jnp.array_equal(out3, x3[:, :, :-128]), "mismatch vs reference (aligned path)"

    print("KERNEL_OK")
</pallas_src>

<mosaic_0001>
module attributes {stable_mosaic.version = 11 : i64} {
  func.func @_chomp_copy_kernel(%arg0: i32, %arg1: i32, %arg2: memref<128x1152xf32, #tpu.memory_space<vmem>>, %arg3: memref<128x1152xf32, #tpu.memory_space<vmem>>) attributes {dimension_semantics = [#tpu.dimension_semantics<parallel>, #tpu.dimension_semantics<parallel>], iteration_bounds = array<i64: 2, 1>, scalar_prefetch = 0 : i64, scratch_operands = 0 : i64, tpu.core_type = #tpu.core_type<tc>, window_params = [{transform_indices = @transform_0, window_bounds = array<i64: 128, 1152>}, {transform_indices = @transform_1, window_bounds = array<i64: 128, 1152>}]} {
    %c0 = arith.constant 0 : index
    %c0_0 = arith.constant 0 : index
    %0 = vector.load %arg2[%c0, %c0_0] : memref<128x1152xf32, #tpu.memory_space<vmem>>, vector<128x1152xf32>
    %c0_1 = arith.constant 0 : index
    %c0_2 = arith.constant 0 : index
    %1 = vector.load %arg3[%c0_1, %c0_2] : memref<128x1152xf32, #tpu.memory_space<vmem>>, vector<128x1152xf32>
    tpu.vector_store %arg3[%c0_1, %c0_2], %0 {strides = array<i32>} : memref<128x1152xf32, #tpu.memory_space<vmem>>, vector<128x1152xf32>,
    return
  }
  func.func @transform_0(%arg0: i32, %arg1: i32) -> (i32, i32) {
    %c0_i32 = arith.constant 0 : i32
    return %arg0, %arg1 : i32, i32
  }
  func.func @transform_1(%arg0: i32, %arg1: i32) -> (i32, i32) {
    %c0_i32 = arith.constant 0 : i32
    return %arg0, %arg1 : i32, i32
  }
}

</mosaic_0001>

<llo_original>
// kernel: tpu_custom_call.1
$region0: #{tpu_custom_call.1}
  #allocation0 [shape = 'u32[]', space=smem, size = 0x4, offset = 0x4, fixed_abs, tag = 'smem constant byte address 0x4 - core index']
  #allocation1 [shape = 'u32[72,128]{1,0:T(1,128)}', space=vmem, size = 0x9000, scoped, tag = 'internal scratch']
  %s0 = inlined_call_operand.hbm [shape: f32[256,1152], index: 0, kind: input, shape index: {}]
  %s1 = inlined_call_operand.hbm [shape: f32[256,1149], index: 1, kind: output, shape index: {}]
  %s2 = sld [smem:[#allocation0]]
  $region41: #{tpu_custom_call.1} parent=0
    _
  %s4 = ssub.s32 1, %s2
  %s5 = scalar_select 0, %s4, %s2
  $region1: #{tpu_custom_call.1} parent=0
    #allocation2 [shape = 'u8[1179648]{0}', space=vmem, size = 0x120000, scoped, tag = 'input window, operand 0']
    #allocation3 [shape = 's32[2]{0}', space=sflag, size = 0x8, scoped, tag = 'scoped memory for tpu_custom_call.1']
    #allocation4 [shape = 's32[2]{0}', space=sflag, size = 0x8, scoped, tag = 'scoped memory for tpu_custom_call.1']
    #allocation5 [shape = 'u8[1179648]{0}', space=vmem, size = 0x120000, scoped, tag = 'output window, operand 0']
    %6 = vsyncpa [#allocation3], 0
    %s7 = scalar_lea.sflag [#allocation3], 1
    %8 = vsyncpa %s7, 0
    %9 = vsyncpa [#allocation4], 0
    %s10 = scalar_lea.sflag [#allocation4], 1
    %11 = vsyncpa %s10, 0
    loop: start=0, step=1, limit=4
    $region2: #{tpu_custom_call.1} parent=1 // loop_pre_header
      _
    $region3: #{tpu_custom_call.1} parent=1 // loop_header
      %s13 = sphi 0, %s17
      %p14 = scmp.ge.s32.totalorder %s13, 4
      %s20 = sphi 0, %s32
      %s21 = sphi 0, %s28
      %s22 = sphi 0, %s20
      %s23 = sphi 0, %s21
      %s24 = sphi 0, %s22
      %s25 = sphi 0, %s23
      %s37 = sphi 0, %s39
      %s40 = sphi 0, %s37
      %s41 = sphi 0, %s40
      %s57 = sphi 0, %s41
      %s65 = sphi 0, %s67
      %s68 = sphi 0, %s65
      %s69 = sphi 0, %s68
      %s85 = sphi 0, %s69
    $region4: #{tpu_custom_call.1} parent=1 // loop_header_branch
      %16 = sbr.rel (%p14) target = $region8
    $region5: #{tpu_custom_call.1} parent=1 // loop_body
      %s18 = ssub.s32 %s13, 1
      %s19 = ssub.s32 %s13, 2
      %s26 = sadd.s32 1, %s21
      %p27 = scmp.ge.s32.totalorder %s26, 1
      %s28 = scalar_select %p27, 0, %s26
      %s29 = sadd.s32 1, %s20
      %s30 = scalar_select %p27, %s29, %s20
      %p31 = scmp.ge.s32.totalorder %s30, 2
      %s32 = scalar_select %p31, 0, %s30
      %s33 = ssub.s32 %s20, %s32
      %s34 = ssub.s32 %s21, %s28
      %s35 = sor.u32 %s33, %s34
      %p36 = scmp.eq.s32.totalorder %s35, 0
      %s38 = sadd.s32 %s37, 1
      %s39 = scalar_select %p36, %s37, %s38
      %p42 = pneg %p36
      %p43 = scmp.eq.s32.totalorder %s13, 1
      %p44 = por %p42, %p43
      %p45 = scmp.ne.s32.totalorder %s37, %s40
      %p46 = scmp.eq.s32.totalorder %s13, 0
      %p47 = por %p45, %p46
      %p48 = scmp.ne.s32.totalorder %s37, %s40
      %p49 = scmp.eq.s32.totalorder %s18, 1
      %p50 = por %p48, %p49
      %p51 = scmp.ne.s32.totalorder %s40, %s41
      %p52 = scmp.eq.s32.totalorder %s18, 0
      %p53 = por %p51, %p52
      %p54 = scmp.ne.s32.totalorder %s40, %s41
      %p55 = scmp.eq.s32.totalorder %s19, 1
      %p56 = por %p54, %p55
      %p58 = scmp.ne.s32.totalorder %s41, %s57
      %p59 = scmp.eq.s32.totalorder %s19, 0
      %p60 = por %p58, %p59
      %s61 = ssub.s32 %s20, %s32
      %s62 = ssub.s32 %s21, %s28
      %s63 = sor.u32 %s61, %s62
      %p64 = scmp.eq.s32.totalorder %s63, 0
      %s66 = sadd.s32 %s65, 1
      %s67 = scalar_select %p64, %s65, %s66
      %p70 = pneg %p64
      %p71 = scmp.eq.s32.totalorder %s13, 1
      %p72 = por %p70, %p71
      %p73 = scmp.ne.s32.totalorder %s65, %s68
      %p74 = scmp.eq.s32.totalorder %s13, 0
      %p75 = por %p73, %p74
      %p76 = scmp.ne.s32.totalorder %s65, %s68
      %p77 = scmp.eq.s32.totalorder %s18, 1
      %p78 = por %p76, %p77
      %p79 = scmp.ne.s32.totalorder %s68, %s69
      %p80 = scmp.eq.s32.totalorder %s18, 0
      %p81 = por %p79, %p80
      %p82 = scmp.ne.s32.totalorder %s68, %s69
      %p83 = scmp.eq.s32.totalorder %s19, 1
      %p84 = por %p82, %p83
      %p86 = scmp.ne.s32.totalorder %s69, %s85
      %p87 = scmp.eq.s32.totalorder %s19, 0
      %p88 = por %p86, %p87
      %p89 = scmp.le.s32.totalorder 1, %s13
      %p90 = scmp.lt.s32.totalorder %s13, 3
      %p91 = pnand %p89, %p90
      %p92 = pneg %p91
      // Predicated region
      $region9: #{tpu_custom_call.1} parent=5 // pred_check
        _
      $region10: #{tpu_custom_call.1} parent=5 // pred_check_branch
        %94 = sbr.rel (%p91) target = $region12
      $region11: #{tpu_custom_call.1} parent=5 // pred_region
        %s95 = ssub.s32 %s13, 1
      $region12: #{tpu_custom_call.1} parent=5 // pred_fallthru
        _
      %p96 = scmp.lt.s32.totalorder %s13, 2
      // Predicated region
      $region13: #{tpu_custom_call.1} parent=5 // pred_check
        %p97 = pneg %p96
      $region14: #{tpu_custom_call.1} parent=5 // pred_check_branch
        %99 = sbr.rel (%p97) target = $region16
      $region15: #{tpu_custom_call.1} parent=5 // pred_region
        // Predicated region
        $region17: #{tpu_custom_call.1} parent=15 // pred_check
          %p100 = pneg %p47
        $region18: #{tpu_custom_call.1} parent=15 // pred_check_branch
          %102 = sbr.rel (%p100) target = $region20
        $region19: #{tpu_custom_call.1} parent=15 // pred_region
          %s103 = sand.u32 %s37, 1
          %s104 = scalar_lea.sflag [#allocation3], %s103
          %s105 = sand.u32 %s37, 1
          %s106 = smul.addr %s105, 1152
          %s107 = scalar_lea.vmem [#allocation2], %s106
          %s108 = smul.u32 16, %s20
          %s109 = smul.u32 9, %s21
          %111 = vsyncadd %s104, 0
          %s112 = smul.addr %s108, 9
          %s113 = sadd.s32 %s109, %s112
          %s114 = smul.addr %s113, 8
          %s115 = scalar_lea.hbm %s0, %s114
          %s116 = sshll.u32 %s115, 4
          %s117 = int_to_ptr.hbm [resolvable:$true] %s116
          %s118 = sshll.u32 %s107, 4
          %s119 = int_to_ptr.vmem [resolvable:$true] %s118
          %124 = dma.hbm_to_vmem [thread:$0]  %s117, 18432, %s119, %s104, 1152, 1152, 72
        $region20: #{tpu_custom_call.1} parent=15 // pred_fallthru
          _
      $region16: #{tpu_custom_call.1} parent=5 // pred_fallthru
        _
      %p125 = scmp.le.s32.totalorder 1, %s13
      %p126 = scmp.lt.s32.totalorder %s13, 3
      %p127 = pnand %p125, %p126
      %p128 = pneg %p127
      // Predicated region
      $region21: #{tpu_custom_call.1} parent=5 // pred_check
        _
      $region22: #{tpu_custom_call.1} parent=5 // pred_check_branch
        %130 = sbr.rel (%p127) target = $region24
      $region23: #{tpu_custom_call.1} parent=5 // pred_region
        %s131 = ssub.s32 %s13, 1
        %s132 = sand.u32 %s40, 1
        %s133 = scalar_lea.sflag [#allocation3], %s132
        %s134 = sand.u32 %s40, 1
        %s135 = smul.addr %s134, 1152
        %s136 = scalar_lea.vmem [#allocation2], %s135
        // Predicated region
        $region25: #{tpu_custom_call.1} parent=23 // pred_check
          %p137 = pneg %p53
        $region26: #{tpu_custom_call.1} parent=23 // pred_check_branch
          %139 = sbr.rel (%p137) target = $region28
        $region27: #{tpu_custom_call.1} parent=23 // pred_region
          %141 = dma.done %s133, 18432
        $region28: #{tpu_custom_call.1} parent=23 // pred_fallthru
          _
        %s142 = sand.u32 %s40, 1
        %s143 = scalar_lea.sflag [#allocation3], %s142
        %s144 = sand.u32 %s40, 1
        %s145 = smul.addr %s144, 1152
        %s146 = scalar_lea.vmem [#allocation2], %s145
        %p147 = pneg %p53
        %p148 = pneg %p50
        %p149 = pneg %p81
        %p150 = pneg %p78
        %s151 = sand.u32 %s68, 1
        %s152 = scalar_lea.sflag [#allocation4], %s151
        %s153 = sand.u32 %s68, 1
        %s154 = smul.addr %s153, 1152
        %s155 = scalar_lea.vmem [#allocation5], %s154
        %s156 = smul.u32 16, %s22
        %s157 = smul.u32 9, %s23
        %s158 = smul.u32 16, %s22
        %s159 = smul.u32 9, %s23
        %v160 = vld [vmem:[%s136] sm:$0xff]
        %v161 = vld [vmem:[%s136 + $0x8] sm:$0xff]
        %v162 = vld [vmem:[%s136 + $0x10] sm:$0xff]
        %v163 = vld [vmem:[%s136 + $0x18] sm:$0xff]
        %v164 = vld [vmem:[%s136 + $0x20] sm:$0xff]
        %v165 = vld [vmem:[%s136 + $0x28] sm:$0xff]
        %v166 = vld [vmem:[%s136 + $0x30] sm:$0xff]
        %v167 = vld [vmem:[%s136 + $0x38] sm:$0xff]
        %v168 = vld [vmem:[%s136 + $0x40] sm:$0xff]
        %v169 = vld [vmem:[%s136 + $0x48] sm:$0xff]
        %v170 = vld [vmem:[%s136 + $0x50] sm:$0xff]
        %v171 = vld [vmem:[%s136 + $0x58] sm:$0xff]
        %v172 = vld [vmem:[%s136 + $0x60] sm:$0xff]
        %v173 = vld [vmem:[%s136 + $0x68] sm:$0xff]
        %v174 = vld [vmem:[%s136 + $0x70] sm:$0xff]
        %v175 = vld [vmem:[%s136 + $0x78] sm:$0xff]
        %v176 = vld [vmem:[%s136 + $0x80] sm:$0xff]
        %v177 = vld [vmem:[%s136 + $0x88] sm:$0xff]
        %v178 = vld [vmem:[%s136 + $0x90] sm:$0xff]
        %v179 = vld [vmem:[%s136 + $0x98] sm:$0xff]
        %v180 = vld [vmem:[%s136 + $0xa0] sm:$0xff]
        %v181 = vld [vmem:[%s136 + $0xa8] sm:$0xff]
        %v182 = vld [vmem:[%s136 + $0xb0] sm:$0xff]
        %v183 = vld [vmem:[%s136 + $0xb8] sm:$0xff]
        %v184 = vld [vmem:[%s136 + $0xc0] sm:$0xff]
        %v185 = vld [vmem:[%s136 + $0xc8] sm:$0xff]
        %v186 = vld [vmem:[%s136 + $0xd0] sm:$0xff]
        %v187 = vld [vmem:[%s136 + $0xd8] sm:$0xff]
        %v188 = vld [vmem:[%s136 + $0xe0] sm:$0xff]
        %v189 = vld [vmem:[%s136 + $0xe8] sm:$0xff]
        %v190 = vld [vmem:[%s136 + $0xf0] sm:$0xff]
        %v191 = vld [vmem:[%s136 + $0xf8] sm:$0xff]
        %v192 = vld [vmem:[%s136 + $0x100] sm:$0xff]
        %v193 = vld [vmem:[%s136 + $0x108] sm:$0xff]
        %v194 = vld [vmem:[%s136 + $0x110] sm:$0xff]
        %v195 = vld [vmem:[%s136 + $0x118] sm:$0xff]
        %v196 = vld [vmem:[%s136 + $0x120] sm:$0xff]
        %v197 = vld [vmem:[%s136 + $0x128] sm:$0xff]
        %v198 = vld [vmem:[%s136 + $0x130] sm:$0xff]
        %v199 = vld [vmem:[%s136 + $0x138] sm:$0xff]
        %v200 = vld [vmem:[%s136 + $0x140] sm:$0xff]
        %v201 = vld [vmem:[%s136 + $0x148] sm:$0xff]
        %v202 = vld [vmem:[%s136 + $0x150] sm:$0xff]
        %v203 = vld [vmem:[%s136 + $0x158] sm:$0xff]
        %v204 = vld [vmem:[%s136 + $0x160] sm:$0xff]
        %v205 = vld [vmem:[%s136 + $0x168] sm:$0xff]
        %v206 = vld [vmem:[%s136 + $0x170] sm:$0xff]
        %v207 = vld [vmem:[%s136 + $0x178] sm:$0xff]
        %v208 = vld [vmem:[%s136 + $0x180] sm:$0xff]
        %v209 = vld [vmem:[%s136 + $0x188] sm:$0xff]
        %v210 = vld [vmem:[%s136 + $0x190] sm:$0xff]
        %v211 = vld [vmem:[%s136 + $0x198] sm:$0xff]
        %v212 = vld [vmem:[%s136 + $0x1a0] sm:$0xff]
        %v213 = vld [vmem:[%s136 + $0x1a8] sm:$0xff]
        %v214 = vld [vmem:[%s136 + $0x1b0] sm:$0xff]
        %v215 = vld [vmem:[%s136 + $0x1b8] sm:$0xff]
        %v216 = vld [vmem:[%s136 + $0x1c0] sm:$0xff]
        %v217 = vld [vmem:[%s136 + $0x1c8] sm:$0xff]
        %v218 = vld [vmem:[%s136 + $0x1d0] sm:$0xff]
        %v219 = vld [vmem:[%s136 + $0x1d8] sm:$0xff]
        %v220 = vld [vmem:[%s136 + $0x1e0] sm:$0xff]
        %v221 = vld [vmem:[%s136 + $0x1e8] sm:$0xff]
        %v222 = vld [vmem:[%s136 + $0x1f0] sm:$0xff]
        %v223 = vld [vmem:[%s136 + $0x1f8] sm:$0xff]
        %v224 = vld [vmem:[%s136 + $0x200] sm:$0xff]
        %v225 = vld [vmem:[%s136 + $0x208] sm:$0xff]
        %v226 = vld [vmem:[%s136 + $0x210] sm:$0xff]
        %v227 = vld [vmem:[%s136 + $0x218] sm:$0xff]
        %v228 = vld [vmem:[%s136 + $0x220] sm:$0xff]
        %v229 = vld [vmem:[%s136 + $0x228] sm:$0xff]
        %v230 = vld [vmem:[%s136 + $0x230] sm:$0xff]
        %v231 = vld [vmem:[%s136 + $0x238] sm:$0xff]
        %v232 = vld [vmem:[%s136 + $0x240] sm:$0xff]
        %v233 = vld [vmem:[%s136 + $0x248] sm:$0xff]
        %v234 = vld [vmem:[%s136 + $0x250] sm:$0xff]
        %v235 = vld [vmem:[%s136 + $0x258] sm:$0xff]
        %v236 = vld [vmem:[%s136 + $0x260] sm:$0xff]
        %v237 = vld [vmem:[%s136 + $0x268] sm:$0xff]
        %v238 = vld [vmem:[%s136 + $0x270] sm:$0xff]
        %v239 = vld [vmem:[%s136 + $0x278] sm:$0xff]
        %v240 = vld [vmem:[%s136 + $0x280] sm:$0xff]
        %v241 = vld [vmem:[%s136 + $0x288] sm:$0xff]
        %v242 = vld [vmem:[%s136 + $0x290] sm:$0xff]
        %v243 = vld [vmem:[%s136 + $0x298] sm:$0xff]
        %v244 = vld [vmem:[%s136 + $0x2a0] sm:$0xff]
        %v245 = vld [vmem:[%s136 + $0x2a8] sm:$0xff]
        %v246 = vld [vmem:[%s136 + $0x2b0] sm:$0xff]
        %v247 = vld [vmem:[%s136 + $0x2b8] sm:$0xff]
        %v248 = vld [vmem:[%s136 + $0x2c0] sm:$0xff]
        %v249 = vld [vmem:[%s136 + $0x2c8] sm:$0xff]
        %v250 = vld [vmem:[%s136 + $0x2d0] sm:$0xff]
        %v251 = vld [vmem:[%s136 + $0x2d8] sm:$0xff]
        %v252 = vld [vmem:[%s136 + $0x2e0] sm:$0xff]
        %v253 = vld [vmem:[%s136 + $0x2e8] sm:$0xff]
        %v254 = vld [vmem:[%s136 + $0x2f0] sm:$0xff]
        %v255 = vld [vmem:[%s136 + $0x2f8] sm:$0xff]
        %v256 = vld [vmem:[%s136 + $0x300] sm:$0xff]
        %v257 = vld [vmem:[%s136 + $0x308] sm:$0xff]
        %v258 = vld [vmem:[%s136 + $0x310] sm:$0xff]
        %v259 = vld [vmem:[%s136 + $0x318] sm:$0xff]
        %v260 = vld [vmem:[%s136 + $0x320] sm:$0xff]
        %v261 = vld [vmem:[%s136 + $0x328] sm:$0xff]
        %v262 = vld [vmem:[%s136 + $0x330] sm:$0xff]
        %v263 = vld [vmem:[%s136 + $0x338] sm:$0xff]
        %v264 = vld [vmem:[%s136 + $0x340] sm:$0xff]
        %v265 = vld [vmem:[%s136 + $0x348] sm:$0xff]
        %v266 = vld [vmem:[%s136 + $0x350] sm:$0xff]
        %v267 = vld [vmem:[%s136 + $0x358] sm:$0xff]
        %v268 = vld [vmem:[%s136 + $0x360] sm:$0xff]
        %v269 = vld [vmem:[%s136 + $0x368] sm:$0xff]
        %v270 = vld [vmem:[%s136 + $0x370] sm:$0xff]
        %v271 = vld [vmem:[%s136 + $0x378] sm:$0xff]
        %v272 = vld [vmem:[%s136 + $0x380] sm:$0xff]
        %v273 = vld [vmem:[%s136 + $0x388] sm:$0xff]
        %v274 = vld [vmem:[%s136 + $0x390] sm:$0xff]
        %v275 = vld [vmem:[%s136 + $0x398] sm:$0xff]
        %v276 = vld [vmem:[%s136 + $0x3a0] sm:$0xff]
        %v277 = vld [vmem:[%s136 + $0x3a8] sm:$0xff]
        %v278 = vld [vmem:[%s136 + $0x3b0] sm:$0xff]
        %v279 = vld [vmem:[%s136 + $0x3b8] sm:$0xff]
        %v280 = vld [vmem:[%s136 + $0x3c0] sm:$0xff]
        %v281 = vld [vmem:[%s136 + $0x3c8] sm:$0xff]
        %v282 = vld [vmem:[%s136 + $0x3d0] sm:$0xff]
        %v283 = vld [vmem:[%s136 + $0x3d8] sm:$0xff]
        %v284 = vld [vmem:[%s136 + $0x3e0] sm:$0xff]
        %v285 = vld [vmem:[%s136 + $0x3e8] sm:$0xff]
        %v286 = vld [vmem:[%s136 + $0x3f0] sm:$0xff]
        %v287 = vld [vmem:[%s136 + $0x3f8] sm:$0xff]
        %v288 = vld [vmem:[%s136 + $0x400] sm:$0xff]
        %v289 = vld [vmem:[%s136 + $0x408] sm:$0xff]
        %v290 = vld [vmem:[%s136 + $0x410] sm:$0xff]
        %v291 = vld [vmem:[%s136 + $0x418] sm:$0xff]
        %v292 = vld [vmem:[%s136 + $0x420] sm:$0xff]
        %v293 = vld [vmem:[%s136 + $0x428] sm:$0xff]
        %v294 = vld [vmem:[%s136 + $0x430] sm:$0xff]
        %v295 = vld [vmem:[%s136 + $0x438] sm:$0xff]
        %v296 = vld [vmem:[%s136 + $0x440] sm:$0xff]
        %v297 = vld [vmem:[%s136 + $0x448] sm:$0xff]
        %v298 = vld [vmem:[%s136 + $0x450] sm:$0xff]
        %v299 = vld [vmem:[%s136 + $0x458] sm:$0xff]
        %v300 = vld [vmem:[%s136 + $0x460] sm:$0xff]
        %v301 = vld [vmem:[%s136 + $0x468] sm:$0xff]
        %v302 = vld [vmem:[%s136 + $0x470] sm:$0xff]
        %v303 = vld [vmem:[%s136 + $0x478] sm:$0xff]
        %304 = vst [vmem:[%s155] sm:$0xff] %v160
        %305 = vst [vmem:[%s155 + $0x8] sm:$0xff] %v161
        %306 = vst [vmem:[%s155 + $0x10] sm:$0xff] %v162
        %307 = vst [vmem:[%s155 + $0x18] sm:$0xff] %v163
        %308 = vst [vmem:[%s155 + $0x20] sm:$0xff] %v164
        %309 = vst [vmem:[%s155 + $0x28] sm:$0xff] %v165
        %310 = vst [vmem:[%s155 + $0x30] sm:$0xff] %v166
        %311 = vst [vmem:[%s155 + $0x38] sm:$0xff] %v167
        %312 = vst [vmem:[%s155 + $0x40] sm:$0xff] %v168
        %313 = vst [vmem:[%s155 + $0x48] sm:$0xff] %v169
        %314 = vst [vmem:[%s155 + $0x50] sm:$0xff] %v170
        %315 = vst [vmem:[%s155 + $0x58] sm:$0xff] %v171
        %316 = vst [vmem:[%s155 + $0x60] sm:$0xff] %v172
        %317 = vst [vmem:[%s155 + $0x68] sm:$0xff] %v173
        %318 = vst [vmem:[%s155 + $0x70] sm:$0xff] %v174
        %319 = vst [vmem:[%s155 + $0x78] sm:$0xff] %v175
        %320 = vst [vmem:[%s155 + $0x80] sm:$0xff] %v176
        %321 = vst [vmem:[%s155 + $0x88] sm:$0xff] %v177
        %322 = vst [vmem:[%s155 + $0x90] sm:$0xff] %v178
        %323 = vst [vmem:[%s155 + $0x98] sm:$0xff] %v179
        %324 = vst [vmem:[%s155 + $0xa0] sm:$0xff] %v180
        %325 = vst [vmem:[%s155 + $0xa8] sm:$0xff] %v181
        %326 = vst [vmem:[%s155 + $0xb0] sm:$0xff] %v182
        %327 = vst [vmem:[%s155 + $0xb8] sm:$0xff] %v183
        %328 = vst [vmem:[%s155 + $0xc0] sm:$0xff] %v184
        %329 = vst [vmem:[%s155 + $0xc8] sm:$0xff] %v185
        %330 = vst [vmem:[%s155 + $0xd0] sm:$0xff] %v186
        %331 = vst [vmem:[%s155 + $0xd8] sm:$0xff] %v187
        %332 = vst [vmem:[%s155 + $0xe0] sm:$0xff] %v188
        %333 = vst [vmem:[%s155 + $0xe8] sm:$0xff] %v189
        %334 = vst [vmem:[%s155 + $0xf0] sm:$0xff] %v190
        %335 = vst [vmem:[%s155 + $0xf8] sm:$0xff] %v191
        %336 = vst [vmem:[%s155 + $0x100] sm:$0xff] %v192
        %337 = vst [vmem:[%s155 + $0x108] sm:$0xff] %v193
        %338 = vst [vmem:[%s155 + $0x110] sm:$0xff] %v194
        %339 = vst [vmem:[%s155 + $0x118] sm:$0xff] %v195
        %340 = vst [vmem:[%s155 + $0x120] sm:$0xff] %v196
        %341 = vst [vmem:[%s155 + $0x128] sm:$0xff] %v197
        %342 = vst [vmem:[%s155 + $0x130] sm:$0xff] %v198
        %343 = vst [vmem:[%s155 + $0x138] sm:$0xff] %v199
        %344 = vst [vmem:[%s155 + $0x140] sm:$0xff] %v200
        %345 = vst [vmem:[%s155 + $0x148] sm:$0xff] %v201
        %346 = vst [vmem:[%s155 + $0x150] sm:$0xff] %v202
        %347 = vst [vmem:[%s155 + $0x158] sm:$0xff] %v203
        %348 = vst [vmem:[%s155 + $0x160] sm:$0xff] %v204
        %349 = vst [vmem:[%s155 + $0x168] sm:$0xff] %v205
        %350 = vst [vmem:[%s155 + $0x170] sm:$0xff] %v206
        %351 = vst [vmem:[%s155 + $0x178] sm:$0xff] %v207
        %352 = vst [vmem:[%s155 + $0x180] sm:$0xff] %v208
        %353 = vst [vmem:[%s155 + $0x188] sm:$0xff] %v209
        %354 = vst [vmem:[%s155 + $0x190] sm:$0xff] %v210
        %355 = vst [vmem:[%s155 + $0x198] sm:$0xff] %v211
        %356 = vst [vmem:[%s155 + $0x1a0] sm:$0xff] %v212
        %357 = vst [vmem:[%s155 + $0x1a8] sm:$0xff] %v213
        %358 = vst [vmem:[%s155 + $0x1b0] sm:$0xff] %v214
        %359 = vst [vmem:[%s155 + $0x1b8] sm:$0xff] %v215
        %360 = vst [vmem:[%s155 + $0x1c0] sm:$0xff] %v216
        %361 = vst [vmem:[%s155 + $0x1c8] sm:$0xff] %v217
        %362 = vst [vmem:[%s155 + $0x1d0] sm:$0xff] %v218
        %363 = vst [vmem:[%s155 + $0x1d8] sm:$0xff] %v219
        %364 = vst [vmem:[%s155 + $0x1e0] sm:$0xff] %v220
        %365 = vst [vmem:[%s155 + $0x1e8] sm:$0xff] %v221
        %366 = vst [vmem:[%s155 + $0x1f0] sm:$0xff] %v222
        %367 = vst [vmem:[%s155 + $0x1f8] sm:$0xff] %v223
        %368 = vst [vmem:[%s155 + $0x200] sm:$0xff] %v224
        %369 = vst [vmem:[%s155 + $0x208] sm:$0xff] %v225
        %370 = vst [vmem:[%s155 + $0x210] sm:$0xff] %v226
        %371 = vst [vmem:[%s155 + $0x218] sm:$0xff] %v227
        %372 = vst [vmem:[%s155 + $0x220] sm:$0xff] %v228
        %373 = vst [vmem:[%s155 + $0x228] sm:$0xff] %v229
        %374 = vst [vmem:[%s155 + $0x230] sm:$0xff] %v230
        %375 = vst [vmem:[%s155 + $0x238] sm:$0xff] %v231
        %376 = vst [vmem:[%s155 + $0x240] sm:$0xff] %v232
        %377 = vst [vmem:[%s155 + $0x248] sm:$0xff] %v233
        %378 = vst [vmem:[%s155 + $0x250] sm:$0xff] %v234
        %379 = vst [vmem:[%s155 + $0x258] sm:$0xff] %v235
        %380 = vst [vmem:[%s155 + $0x260] sm:$0xff] %v236
        %381 = vst [vmem:[%s155 + $0x268] sm:$0xff] %v237
        %382 = vst [vmem:[%s155 + $0x270] sm:$0xff] %v238
        %383 = vst [vmem:[%s155 + $0x278] sm:$0xff] %v239
        %384 = vst [vmem:[%s155 + $0x280] sm:$0xff] %v240
        %385 = vst [vmem:[%s155 + $0x288] sm:$0xff] %v241
        %386 = vst [vmem:[%s155 + $0x290] sm:$0xff] %v242
        %387 = vst [vmem:[%s155 + $0x298] sm:$0xff] %v243
        %388 = vst [vmem:[%s155 + $0x2a0] sm:$0xff] %v244
        %389 = vst [vmem:[%s155 + $0x2a8] sm:$0xff] %v245
        %390 = vst [vmem:[%s155 + $0x2b0] sm:$0xff] %v246
        %391 = vst [vmem:[%s155 + $0x2b8] sm:$0xff] %v247
        %392 = vst [vmem:[%s155 + $0x2c0] sm:$0xff] %v248
        %393 = vst [vmem:[%s155 + $0x2c8] sm:$0xff] %v249
        %394 = vst [vmem:[%s155 + $0x2d0] sm:$0xff] %v250
        %395 = vst [vmem:[%s155 + $0x2d8] sm:$0xff] %v251
        %396 = vst [vmem:[%s155 + $0x2e0] sm:$0xff] %v252
        %397 = vst [vmem:[%s155 + $0x2e8] sm:$0xff] %v253
        %398 = vst [vmem:[%s155 + $0x2f0] sm:$0xff] %v254
        %399 = vst [vmem:[%s155 + $0x2f8] sm:$0xff] %v255
        %400 = vst [vmem:[%s155 + $0x300] sm:$0xff] %v256
        %401 = vst [vmem:[%s155 + $0x308] sm:$0xff] %v257
        %402 = vst [vmem:[%s155 + $0x310] sm:$0xff] %v258
        %403 = vst [vmem:[%s155 + $0x318] sm:$0xff] %v259
        %404 = vst [vmem:[%s155 + $0x320] sm:$0xff] %v260
        %405 = vst [vmem:[%s155 + $0x328] sm:$0xff] %v261
        %406 = vst [vmem:[%s155 + $0x330] sm:$0xff] %v262
        %407 = vst [vmem:[%s155 + $0x338] sm:$0xff] %v263
        %408 = vst [vmem:[%s155 + $0x340] sm:$0xff] %v264
        %409 = vst [vmem:[%s155 + $0x348] sm:$0xff] %v265
        %410 = vst [vmem:[%s155 + $0x350] sm:$0xff] %v266
        %411 = vst [vmem:[%s155 + $0x358] sm:$0xff] %v267
        %412 = vst [vmem:[%s155 + $0x360] sm:$0xff] %v268
        %413 = vst [vmem:[%s155 + $0x368] sm:$0xff] %v269
        %414 = vst [vmem:[%s155 + $0x370] sm:$0xff] %v270
        %415 = vst [vmem:[%s155 + $0x378] sm:$0xff] %v271
        %416 = vst [vmem:[%s155 + $0x380] sm:$0xff] %v272
        %417 = vst [vmem:[%s155 + $0x388] sm:$0xff] %v273
        %418 = vst [vmem:[%s155 + $0x390] sm:$0xff] %v274
        %419 = vst [vmem:[%s155 + $0x398] sm:$0xff] %v275
        %420 = vst [vmem:[%s155 + $0x3a0] sm:$0xff] %v276
        %421 = vst [vmem:[%s155 + $0x3a8] sm:$0xff] %v277
        %422 = vst [vmem:[%s155 + $0x3b0] sm:$0xff] %v278
        %423 = vst [vmem:[%s155 + $0x3b8] sm:$0xff] %v279
        %424 = vst [vmem:[%s155 + $0x3c0] sm:$0xff] %v280
        %425 = vst [vmem:[%s155 + $0x3c8] sm:$0xff] %v281
        %426 = vst [vmem:[%s155 + $0x3d0] sm:$0xff] %v282
        %427 = vst [vmem:[%s155 + $0x3d8] sm:$0xff] %v283
        %428 = vst [vmem:[%s155 + $0x3e0] sm:$0xff] %v284
        %429 = vst [vmem:[%s155 + $0x3e8] sm:$0xff] %v285
        %430 = vst [vmem:[%s155 + $0x3f0] sm:$0xff] %v286
        %431 = vst [vmem:[%s155 + $0x3f8] sm:$0xff] %v287
        %432 = vst [vmem:[%s155 + $0x400] sm:$0xff] %v288
        %433 = vst [vmem:[%s155 + $0x408] sm:$0xff] %v289
        %434 = vst [vmem:[%s155 + $0x410] sm:$0xff] %v290
        %435 = vst [vmem:[%s155 + $0x418] sm:$0xff] %v291
        %436 = vst [vmem:[%s155 + $0x420] sm:$0xff] %v292
        %437 = vst [vmem:[%s155 + $0x428] sm:$0xff] %v293
        %438 = vst [vmem:[%s155 + $0x430] sm:$0xff] %v294
        %439 = vst [vmem:[%s155 + $0x438] sm:$0xff] %v295
        %440 = vst [vmem:[%s155 + $0x440] sm:$0xff] %v296
        %441 = vst [vmem:[%s155 + $0x448] sm:$0xff] %v297
        %442 = vst [vmem:[%s155 + $0x450] sm:$0xff] %v298
        %443 = vst [vmem:[%s155 + $0x458] sm:$0xff] %v299
        %444 = vst [vmem:[%s155 + $0x460] sm:$0xff] %v300
        %445 = vst [vmem:[%s155 + $0x468] sm:$0xff] %v301
        %446 = vst [vmem:[%s155 + $0x470] sm:$0xff] %v302
        %447 = vst [vmem:[%s155 + $0x478] sm:$0xff] %v303
        %s448 = sand.u32 %s68, 1
        %s449 = scalar_lea.sflag [#allocation4], %s448
        %s450 = sand.u32 %s68, 1
        %s451 = smul.addr %s450, 1152
        %s452 = scalar_lea.vmem [#allocation5], %s451
        // Predicated region
        $region29: #{tpu_custom_call.1} parent=23 // pred_check
          %p453 = pneg %p78
        $region30: #{tpu_custom_call.1} parent=23 // pred_check_branch
          %455 = sbr.rel (%p453) target = $region32
        $region31: #{tpu_custom_call.1} parent=23 // pred_region
          %s456 = smul.u32 16, %s22
          %s457 = smul.u32 9, %s23
          %459 = vsyncadd %s449, 0
          %s460 = smul.addr %s456, 9
          %s461 = sadd.s32 %s457, %s460
          %s462 = smul.addr %s461, 8
          %s463 = scalar_lea.hbm %s1, %s462
          %s464 = sshll.u32 %s452, 4
          %s465 = int_to_ptr.vmem [resolvable:$true] %s464
          %s466 = sshll.u32 %s463, 4
          %s467 = int_to_ptr.hbm [resolvable:$true] %s466
          %472 = dma.vmem_to_hbm [thread:$0]  %s465, 18432, %s467, %s449, 1152, 1152, 72
        $region32: #{tpu_custom_call.1} parent=23 // pred_fallthru
          _
      $region24: #{tpu_custom_call.1} parent=5 // pred_fallthru
        _
      %p473 = scmp.le.s32.totalorder 2, %s13
      // Predicated region
      $region33: #{tpu_custom_call.1} parent=5 // pred_check
        %p474 = pneg %p473
      $region34: #{tpu_custom_call.1} parent=5 // pred_check_branch
        %476 = sbr.rel (%p474) target = $region36
      $region35: #{tpu_custom_call.1} parent=5 // pred_region
        %s477 = ssub.s32 %s13, 2
        // Predicated region
        $region37: #{tpu_custom_call.1} parent=35 // pred_check
          %p478 = pneg %p84
        $region38: #{tpu_custom_call.1} parent=35 // pred_check_branch
          %480 = sbr.rel (%p478) target = $region40
        $region39: #{tpu_custom_call.1} parent=35 // pred_region
          %s481 = sand.u32 %s69, 1
          %s482 = scalar_lea.sflag [#allocation4], %s481
          %s483 = sand.u32 %s69, 1
          %s484 = smul.addr %s483, 1152
          %s485 = scalar_lea.vmem [#allocation5], %s484
          %487 = dma.done %s482, 18432
        $region40: #{tpu_custom_call.1} parent=35 // pred_fallthru
          _
      $region36: #{tpu_custom_call.1} parent=5 // pred_fallthru
        _
    $region6: #{tpu_custom_call.1} parent=1 // loop_footer
      %s17 = sadd.s32 1, %s13
    $region7: #{tpu_custom_call.1} parent=1 // loop_footer_branch
      %12 = sbr.rel target = $region3
    $region8: #{tpu_custom_call.1} parent=1 // loop_exit
      _
    %488 = vsyncpa [#allocation3], 1
    %s489 = scalar_lea.sflag [#allocation3], 1
    %490 = vsyncpa %s489, 1
    %491 = vsyncpa [#allocation4], 1
    %s492 = scalar_lea.sflag [#allocation4], 1
    %493 = vsyncpa %s492, 1

</llo_original>
